<compile_context>
chip_gen: v5e
topology: v5e:2x2
jax: 0.10.0
libtpu: 0.0.40
codegen_flags: <defaults>
</compile_context>

<pallas_src>
import numpy as np
import jax
import jax.numpy as jnp
from jax.experimental import pallas as pl
from jax.experimental.pallas import tpu as pltpu


# -----------------------------------------------------------------------------
# Mesh construction + param init (replaces trimesh.creation.box / normalize_verts)
# -----------------------------------------------------------------------------
def make_box_mesh():
    # 8 corners of a unit box centered at origin, 12 triangular faces.
    corners = np.array(
        [[x, y, z] for x in (-0.5, 0.5) for y in (-0.5, 0.5) for z in (-0.5, 0.5)],
        dtype=np.float32,
    )
    faces = np.array(
        [
            [0, 1, 3], [0, 3, 2],   # x = -0.5
            [4, 6, 7], [4, 7, 5],   # x = +0.5
            [0, 4, 5], [0, 5, 1],   # y = -0.5
            [2, 3, 7], [2, 7, 6],   # y = +0.5
            [0, 2, 6], [0, 6, 4],   # z = -0.5
            [1, 5, 7], [1, 7, 3],   # z = +0.5
        ],
        dtype=np.float32,  # kept float to mirror the original module's buffer dtype
    )
    return corners, faces


def normalize_verts(verts, radius=1.0):
    # center then scale so the farthest vertex sits at distance `radius`.
    center = verts.mean(axis=0, keepdims=True)
    v = verts - center
    s = radius / np.linalg.norm(v, axis=1).max()
    return (v * s).astype(np.float32)


def compute_rotation_matrix_from_ortho6d(ortho6d):
    # Zhou et al. ortho6d -> rotation matrix (columns x, y, z).  Tiny (B, 6): JAX glue.
    x_raw = ortho6d[:, 0:3]
    y_raw = ortho6d[:, 3:6]

    def _normalize(v):
        mag = jnp.maximum(jnp.linalg.norm(v, axis=-1, keepdims=True), 1e-8)
        return v / mag

    x = _normalize(x_raw)
    z = _normalize(jnp.cross(x, y_raw))
    y = jnp.cross(z, x)
    return jnp.stack([x, y, z], axis=-1)  # (B, 3, 3)


# -----------------------------------------------------------------------------
# Lane-dense layout plumbing (done ONCE at module init, not per forward)
# -----------------------------------------------------------------------------
def _round_up(x, m):
    return ((x + m - 1) // m) * m


def prepare_verts_lanedense(verts, tsv_target=512):
    """(B, V, 3) -> lane-dense (B, 3, SVp, 128) planes + chosen sublane tile TSV.

    SVp*128 >= V; padded vertices are zero (they come out of the kernel as `trans`
    and are sliced away by lanedense_to_bv3).
    """
    assert tsv_target % 8 == 0, "tsv_target must be a multiple of 8 (sublane tiling)"
    B, V, _ = verts.shape
    SV = pl.cdiv(V, 128)                 # rows of 128 vertices
    if SV <= tsv_target:
        TSV = SV                         # single tile == full dim (tiny meshes)
        SVp = SV
    else:
        TSV = tsv_target                 # multiple of 8: satisfies (8,128) blocking
        SVp = _round_up(SV, TSV)
    Vp = SVp * 128

    verts_t = jnp.transpose(verts, (0, 2, 1))               # (B, 3, V)
    if Vp != V:
        verts_t = jnp.pad(verts_t, ((0, 0), (0, 0), (0, Vp - V)))
    verts_ld = verts_t.reshape(B, 3, SVp, 128)               # dense (rows,128) planes
    return verts_ld, TSV


def lanedense_to_bv3(out_ld, V):
    """Lane-dense (B, 3, SVp, 128) -> (B, V, 3).  Only needed if a downstream
    consumer requires the original layout; otherwise keep lane-dense."""
    B = out_ld.shape[0]
    flat = out_ld.reshape(B, 3, -1)[:, :, :V]
    return jnp.transpose(flat, (0, 2, 1))


# -----------------------------------------------------------------------------
# Pallas kernel:
#   out[b, j, r, l] = (sum_k v[b, k, r, l] * R[b, k, j]) * s + t[b, j]
#   with (r, l) dense (TSV, 128) vertex planes -> full [8,128] vregs, unpadded DMA.
# -----------------------------------------------------------------------------
def _transform_kernel(scale_ref, rot_ref, trans_ref, verts_ref, out_ref):
    # scale_ref : SMEM (1,)      rot_ref : SMEM (B*9,)     trans_ref : SMEM (B*3,)
    # verts_ref : VMEM (B, 3, TSV, 128)   out_ref : VMEM (B, 3, TSV, 128)
    s = scale_ref[0]
    B = verts_ref.shape[0]
    for b in range(B):                       # B is small & static: unroll
        vx = verts_ref[b, 0]                 # (TSV, 128) dense plane
        vy = verts_ref[b, 1]
        vz = verts_ref[b, 2]
        for j in range(3):                   # output coordinate column j
            r0 = rot_ref[b * 9 + 0 * 3 + j]  # scalars from SMEM, broadcast on VPU
            r1 = rot_ref[b * 9 + 1 * 3 + j]
            r2 = rot_ref[b * 9 + 2 * 3 + j]
            t = trans_ref[b * 3 + j]
            rv = vx * r0 + vy * r1 + vz * r2           # K=3 contraction on the VPU
            out_ref[b, j] = (rv * s + t).astype(out_ref.dtype)


def transform_verts_lanedense(verts_ld, rot_mats, scale, trans, tsv):
    """verts_ld (B,3,SVp,128) transformed by R/s/t -> lane-dense (B,3,SVp,128)."""
    B, _, SVp, _ = verts_ld.shape
    assert SVp % tsv == 0
    n_tiles = SVp // tsv

    rot_flat = rot_mats.reshape(B * 9).astype(jnp.float32)    # SMEM scalars
    trans_flat = trans.reshape(B * 3).astype(jnp.float32)
    scale_flat = scale.reshape(-1).astype(jnp.float32)

    return pl.pallas_call(
        _transform_kernel,
        out_shape=jax.ShapeDtypeStruct((B, 3, SVp, 128), verts_ld.dtype),
        grid=(n_tiles,),
        in_specs=[
            pl.BlockSpec(memory_space=pltpu.MemorySpace.SMEM),     # scale (1,)
            pl.BlockSpec(memory_space=pltpu.MemorySpace.SMEM),     # rot_flat (B*9,)
            pl.BlockSpec(memory_space=pltpu.MemorySpace.SMEM),     # trans_flat (B*3,)
            pl.BlockSpec((B, 3, tsv, 128), lambda i: (0, 0, i, 0)),  # verts planes
        ],
        out_specs=pl.BlockSpec((B, 3, tsv, 128), lambda i: (0, 0, i, 0)),
        compiler_params=pltpu.CompilerParams(
            dimension_semantics=("parallel",)),   # shard V tiles across v7x cores
    )(scale_flat, rot_flat, trans_flat, verts_ld)


def icosphere_forward(verts_ld, tsv, faces, rot_vecs, trans, scale, V):
    rot_mats = compute_rotation_matrix_from_ortho6d(rot_vecs)
    out_ld = transform_verts_lanedense(verts_ld, rot_mats, scale, trans, tsv)
    # Back-conversion kept outside the kernel; lane-dense consumers can use out_ld
    # directly and skip this (padded lanes >= V hold `trans` values).
    trans_verts = lanedense_to_bv3(out_ld, V)
    return {
        "verts": trans_verts,
        "faces": faces,
        "rot_mats": rot_mats,
        "scales": scale,
        "trans": trans,
        "rot_vecs": rot_vecs,
    }


# -----------------------------------------------------------------------------
if __name__ == "__main__":
    B = 2
    radius = 0.2
    x_off, y_off, z_off = 0.0, 0.0, 0.5

    # buffers (mesh_type='box')
    # TODO(synk): mesh_type='sphere' needs pytorch3d's ico_sphere(2); only 'box' here.
    box_verts, box_faces = make_box_mesh()
    norm_verts = normalize_verts(box_verts, 1.0)                      # (8, 3)
    verts = jnp.asarray(np.tile(norm_verts[None], (B, 1, 1)))         # (B, 8, 3)
    faces = jnp.asarray(np.tile(box_faces[None], (B, 1, 1)))          # (B, 12, 3)
    V = verts.shape[1]

    # one-time (module init) lane-dense layout of the static mesh buffer
    verts_ld, tsv = prepare_verts_lanedense(verts)

    # parameters (deterministic "random_rot=True")
    key = jax.random.PRNGKey(0)
    rot_vecs = jax.random.normal(key, (B, 6), dtype=jnp.float32)
    trans = (jnp.zeros((B, 3), jnp.float32)
             + jnp.array([x_off, y_off, z_off], jnp.float32)[None, :])
    scale = jnp.array([radius], jnp.float32)

    out = icosphere_forward(verts_ld, tsv, faces, rot_vecs, trans, scale, V)
    jax.block_until_ready(out)

    # pure-JAX reference check of the kernel hot path
    rot_mats_ref = compute_rotation_matrix_from_ortho6d(rot_vecs)
    ref = (jnp.einsum("bvk,bkj->bvj", verts, rot_mats_ref)
           * scale.reshape(-1, 1, 1) + trans[:, None, :])
    assert out["verts"].shape == (B, V, 3)
    assert np.allclose(np.asarray(out["verts"]), np.asarray(ref), atol=1e-5)

    print("KERNEL_OK")
</pallas_src>

<mosaic_0001>
module attributes {stable_mosaic.version = 11 : i64} {
  func.func @_transform_kernel(%arg0: i32, %arg1: memref<1xf32, #tpu.memory_space<smem>>, %arg2: memref<18xf32, #tpu.memory_space<smem>>, %arg3: memref<6xf32, #tpu.memory_space<smem>>, %arg4: memref<2x3x1x128xf32, #tpu.memory_space<vmem>>, %arg5: memref<2x3x1x128xf32, #tpu.memory_space<vmem>>) attributes {dimension_semantics = [#tpu.dimension_semantics<parallel>], iteration_bounds = array<i64: 1>, scalar_prefetch = 0 : i64, scratch_operands = 0 : i64, tpu.core_type = #tpu.core_type<tc>, window_params = [{transform_indices = @transform_0, window_bounds = array<i64: 1>}, {transform_indices = @transform_1, window_bounds = array<i64: 18>}, {transform_indices = @transform_2, window_bounds = array<i64: 6>}, {transform_indices = @transform_3, window_bounds = array<i64: 2, 3, 1, 128>}, {transform_indices = @transform_4, window_bounds = array<i64: 2, 3, 1, 128>}]} {
    %c0 = arith.constant 0 : index
    %0 = memref.load %arg1[%c0] : memref<1xf32, #tpu.memory_space<smem>>
    %c0_0 = arith.constant 0 : index
    %c0_1 = arith.constant 0 : index
    %c0_2 = arith.constant 0 : index
    %c0_3 = arith.constant 0 : index
    %1 = vector.load %arg4[%c0_0, %c0_1, %c0_2, %c0_3] : memref<2x3x1x128xf32, #tpu.memory_space<vmem>>, vector<1x1x1x128xf32>
    %2 = vector.shape_cast %1 : vector<1x1x1x128xf32> to vector<1x128xf32>
    %c0_4 = arith.constant 0 : index
    %c1 = arith.constant 1 : index
    %c0_5 = arith.constant 0 : index
    %c0_6 = arith.constant 0 : index
    %3 = vector.load %arg4[%c0_4, %c1, %c0_5, %c0_6] : memref<2x3x1x128xf32, #tpu.memory_space<vmem>>, vector<1x1x1x128xf32>
    %4 = vector.shape_cast %3 : vector<1x1x1x128xf32> to vector<1x128xf32>
    %c0_7 = arith.constant 0 : index
    %c2 = arith.constant 2 : index
    %c0_8 = arith.constant 0 : index
    %c0_9 = arith.constant 0 : index
    %5 = vector.load %arg4[%c0_7, %c2, %c0_8, %c0_9] : memref<2x3x1x128xf32, #tpu.memory_space<vmem>>, vector<1x1x1x128xf32>
    %6 = vector.shape_cast %5 : vector<1x1x1x128xf32> to vector<1x128xf32>
    %c0_10 = arith.constant 0 : index
    %7 = memref.load %arg2[%c0_10] : memref<18xf32, #tpu.memory_space<smem>>
    %c3 = arith.constant 3 : index
    %8 = memref.load %arg2[%c3] : memref<18xf32, #tpu.memory_space<smem>>
    %c6 = arith.constant 6 : index
    %9 = memref.load %arg2[%c6] : memref<18xf32, #tpu.memory_space<smem>>
    %c0_11 = arith.constant 0 : index
    %10 = memref.load %arg3[%c0_11] : memref<6xf32, #tpu.memory_space<smem>>
    %11 = vector.broadcast %7 : f32 to vector<1x128xf32>
    %12 = arith.mulf %2, %11 : vector<1x128xf32>
    %13 = vector.broadcast %8 : f32 to vector<1x128xf32>
    %14 = arith.mulf %4, %13 : vector<1x128xf32>
    %15 = arith.addf %12, %14 : vector<1x128xf32>
    %16 = vector.broadcast %9 : f32 to vector<1x128xf32>
    %17 = arith.mulf %6, %16 : vector<1x128xf32>
    %18 = arith.addf %15, %17 : vector<1x128xf32>
    %19 = vector.broadcast %0 : f32 to vector<1x128xf32>
    %20 = arith.mulf %18, %19 : vector<1x128xf32>
    %21 = vector.broadcast %10 : f32 to vector<1x128xf32>
    %22 = arith.addf %20, %21 : vector<1x128xf32>
    %c0_12 = arith.constant 0 : index
    %c0_13 = arith.constant 0 : index
    %c0_14 = arith.constant 0 : index
    %c0_15 = arith.constant 0 : index
    %23 = vector.load %arg5[%c0_12, %c0_13, %c0_14, %c0_15] : memref<2x3x1x128xf32, #tpu.memory_space<vmem>>, vector<1x1x1x128xf32>
    %24 = vector.shape_cast %23 : vector<1x1x1x128xf32> to vector<1x128xf32>
    %25 = vector.shape_cast %22 : vector<1x128xf32> to vector<1x1x1x128xf32>
    tpu.vector_store %arg5[%c0_12, %c0_13, %c0_14, %c0_15], %25 {strides = array<i32>} : memref<2x3x1x128xf32, #tpu.memory_space<vmem>>, vector<1x1x1x128xf32>,
    %c1_16 = arith.constant 1 : index
    %26 = memref.load %arg2[%c1_16] : memref<18xf32, #tpu.memory_space<smem>>
    %c4 = arith.constant 4 : index
    %27 = memref.load %arg2[%c4] : memref<18xf32, #tpu.memory_space<smem>>
    %c7 = arith.constant 7 : index
    %28 = memref.load %arg2[%c7] : memref<18xf32, #tpu.memory_space<smem>>
    %c1_17 = arith.constant 1 : index
    %29 = memref.load %arg3[%c1_17] : memref<6xf32, #tpu.memory_space<smem>>
    %30 = vector.broadcast %26 : f32 to vector<1x128xf32>
    %31 = arith.mulf %2, %30 : vector<1x128xf32>
    %32 = vector.broadcast %27 : f32 to vector<1x128xf32>
    %33 = arith.mulf %4, %32 : vector<1x128xf32>
    %34 = arith.addf %31, %33 : vector<1x128xf32>
    %35 = vector.broadcast %28 : f32 to vector<1x128xf32>
    %36 = arith.mulf %6, %35 : vector<1x128xf32>
    %37 = arith.addf %34, %36 : vector<1x128xf32>
    %38 = vector.broadcast %0 : f32 to vector<1x128xf32>
    %39 = arith.mulf %37, %38 : vector<1x128xf32>
    %40 = vector.broadcast %29 : f32 to vector<1x128xf32>
    %41 = arith.addf %39, %40 : vector<1x128xf32>
    %c0_18 = arith.constant 0 : index
    %c1_19 = arith.constant 1 : index
    %c0_20 = arith.constant 0 : index
    %c0_21 = arith.constant 0 : index
    %42 = vector.load %arg5[%c0_18, %c1_19, %c0_20, %c0_21] : memref<2x3x1x128xf32, #tpu.memory_space<vmem>>, vector<1x1x1x128xf32>
    %43 = vector.shape_cast %42 : vector<1x1x1x128xf32> to vector<1x128xf32>
    %44 = vector.shape_cast %41 : vector<1x128xf32> to vector<1x1x1x128xf32>
    tpu.vector_store %arg5[%c0_18, %c1_19, %c0_20, %c0_21], %44 {strides = array<i32>} : memref<2x3x1x128xf32, #tpu.memory_space<vmem>>, vector<1x1x1x128xf32>,
    %c2_22 = arith.constant 2 : index
    %45 = memref.load %arg2[%c2_22] : memref<18xf32, #tpu.memory_space<smem>>
    %c5 = arith.constant 5 : index
    %46 = memref.load %arg2[%c5] : memref<18xf32, #tpu.memory_space<smem>>
    %c8 = arith.constant 8 : index
    %47 = memref.load %arg2[%c8] : memref<18xf32, #tpu.memory_space<smem>>
    %c2_23 = arith.constant 2 : index
    %48 = memref.load %arg3[%c2_23] : memref<6xf32, #tpu.memory_space<smem>>
    %49 = vector.broadcast %45 : f32 to vector<1x128xf32>
    %50 = arith.mulf %2, %49 : vector<1x128xf32>
    %51 = vector.broadcast %46 : f32 to vector<1x128xf32>
    %52 = arith.mulf %4, %51 : vector<1x128xf32>
    %53 = arith.addf %50, %52 : vector<1x128xf32>
    %54 = vector.broadcast %47 : f32 to vector<1x128xf32>
    %55 = arith.mulf %6, %54 : vector<1x128xf32>
    %56 = arith.addf %53, %55 : vector<1x128xf32>
    %57 = vector.broadcast %0 : f32 to vector<1x128xf32>
    %58 = arith.mulf %56, %57 : vector<1x128xf32>
    %59 = vector.broadcast %48 : f32 to vector<1x128xf32>
    %60 = arith.addf %58, %59 : vector<1x128xf32>
    %c0_24 = arith.constant 0 : index
    %c2_25 = arith.constant 2 : index
    %c0_26 = arith.constant 0 : index
    %c0_27 = arith.constant 0 : index
    %61 = vector.load %arg5[%c0_24, %c2_25, %c0_26, %c0_27] : memref<2x3x1x128xf32, #tpu.memory_space<vmem>>, vector<1x1x1x128xf32>
    %62 = vector.shape_cast %61 : vector<1x1x1x128xf32> to vector<1x128xf32>
    %63 = vector.shape_cast %60 : vector<1x128xf32> to vector<1x1x1x128xf32>
    tpu.vector_store %arg5[%c0_24, %c2_25, %c0_26, %c0_27], %63 {strides = array<i32>} : memref<2x3x1x128xf32, #tpu.memory_space<vmem>>, vector<1x1x1x128xf32>,
    %c1_28 = arith.constant 1 : index
    %c0_29 = arith.constant 0 : index
    %c0_30 = arith.constant 0 : index
    %c0_31 = arith.constant 0 : index
    %64 = vector.load %arg4[%c1_28, %c0_29, %c0_30, %c0_31] : memref<2x3x1x128xf32, #tpu.memory_space<vmem>>, vector<1x1x1x128xf32>
    %65 = vector.shape_cast %64 : vector<1x1x1x128xf32> to vector<1x128xf32>
    %c1_32 = arith.constant 1 : index
    %c1_33 = arith.constant 1 : index
    %c0_34 = arith.constant 0 : index
    %c0_35 = arith.constant 0 : index
    %66 = vector.load %arg4[%c1_32, %c1_33, %c0_34, %c0_35] : memref<2x3x1x128xf32, #tpu.memory_space<vmem>>, vector<1x1x1x128xf32>
    %67 = vector.shape_cast %66 : vector<1x1x1x128xf32> to vector<1x128xf32>
    %c1_36 = arith.constant 1 : index
    %c2_37 = arith.constant 2 : index
    %c0_38 = arith.constant 0 : index
    %c0_39 = arith.constant 0 : index
    %68 = vector.load %arg4[%c1_36, %c2_37, %c0_38, %c0_39] : memref<2x3x1x128xf32, #tpu.memory_space<vmem>>, vector<1x1x1x128xf32>
    %69 = vector.shape_cast %68 : vector<1x1x1x128xf32> to vector<1x128xf32>
    %c9 = arith.constant 9 : index
    %70 = memref.load %arg2[%c9] : memref<18xf32, #tpu.memory_space<smem>>
    %c12 = arith.constant 12 : index
    %71 = memref.load %arg2[%c12] : memref<18xf32, #tpu.memory_space<smem>>
    %c15 = arith.constant 15 : index
    %72 = memref.load %arg2[%c15] : memref<18xf32, #tpu.memory_space<smem>>
    %c3_40 = arith.constant 3 : index
    %73 = memref.load %arg3[%c3_40] : memref<6xf32, #tpu.memory_space<smem>>
    %74 = vector.broadcast %70 : f32 to vector<1x128xf32>
    %75 = arith.mulf %65, %74 : vector<1x128xf32>
    %76 = vector.broadcast %71 : f32 to vector<1x128xf32>
    %77 = arith.mulf %67, %76 : vector<1x128xf32>
    %78 = arith.addf %75, %77 : vector<1x128xf32>
    %79 = vector.broadcast %72 : f32 to vector<1x128xf32>
    %80 = arith.mulf %69, %79 : vector<1x128xf32>
    %81 = arith.addf %78, %80 : vector<1x128xf32>
    %82 = vector.broadcast %0 : f32 to vector<1x128xf32>
    %83 = arith.mulf %81, %82 : vector<1x128xf32>
    %84 = vector.broadcast %73 : f32 to vector<1x128xf32>
    %85 = arith.addf %83, %84 : vector<1x128xf32>
    %c1_41 = arith.constant 1 : index
    %c0_42 = arith.constant 0 : index
    %c0_43 = arith.constant 0 : index
    %c0_44 = arith.constant 0 : index
    %86 = vector.load %arg5[%c1_41, %c0_42, %c0_43, %c0_44] : memref<2x3x1x128xf32, #tpu.memory_space<vmem>>, vector<1x1x1x128xf32>
    %87 = vector.shape_cast %86 : vector<1x1x1x128xf32> to vector<1x128xf32>
    %88 = vector.shape_cast %85 : vector<1x128xf32> to vector<1x1x1x128xf32>
    tpu.vector_store %arg5[%c1_41, %c0_42, %c0_43, %c0_44], %88 {strides = array<i32>} : memref<2x3x1x128xf32, #tpu.memory_space<vmem>>, vector<1x1x1x128xf32>,
    %c10 = arith.constant 10 : index
    %89 = memref.load %arg2[%c10] : memref<18xf32, #tpu.memory_space<smem>>
    %c13 = arith.constant 13 : index
    %90 = memref.load %arg2[%c13] : memref<18xf32, #tpu.memory_space<smem>>
    %c16 = arith.constant 16 : index
    %91 = memref.load %arg2[%c16] : memref<18xf32, #tpu.memory_space<smem>>
    %c4_45 = arith.constant 4 : index
    %92 = memref.load %arg3[%c4_45] : memref<6xf32, #tpu.memory_space<smem>>
    %93 = vector.broadcast %89 : f32 to vector<1x128xf32>
    %94 = arith.mulf %65, %93 : vector<1x128xf32>
    %95 = vector.broadcast %90 : f32 to vector<1x128xf32>
    %96 = arith.mulf %67, %95 : vector<1x128xf32>
    %97 = arith.addf %94, %96 : vector<1x128xf32>
    %98 = vector.broadcast %91 : f32 to vector<1x128xf32>
    %99 = arith.mulf %69, %98 : vector<1x128xf32>
    %100 = arith.addf %97, %99 : vector<1x128xf32>
    %101 = vector.broadcast %0 : f32 to vector<1x128xf32>
    %102 = arith.mulf %100, %101 : vector<1x128xf32>
    %103 = vector.broadcast %92 : f32 to vector<1x128xf32>
    %104 = arith.addf %102, %103 : vector<1x128xf32>
    %c1_46 = arith.constant 1 : index
    %c1_47 = arith.constant 1 : index
    %c0_48 = arith.constant 0 : index
    %c0_49 = arith.constant 0 : index
    %105 = vector.load %arg5[%c1_46, %c1_47, %c0_48, %c0_49] : memref<2x3x1x128xf32, #tpu.memory_space<vmem>>, vector<1x1x1x128xf32>
    %106 = vector.shape_cast %105 : vector<1x1x1x128xf32> to vector<1x128xf32>
    %107 = vector.shape_cast %104 : vector<1x128xf32> to vector<1x1x1x128xf32>
    tpu.vector_store %arg5[%c1_46, %c1_47, %c0_48, %c0_49], %107 {strides = array<i32>} : memref<2x3x1x128xf32, #tpu.memory_space<vmem>>, vector<1x1x1x128xf32>,
    %c11 = arith.constant 11 : index
    %108 = memref.load %arg2[%c11] : memref<18xf32, #tpu.memory_space<smem>>
    %c14 = arith.constant 14 : index
    %109 = memref.load %arg2[%c14] : memref<18xf32, #tpu.memory_space<smem>>
    %c17 = arith.constant 17 : index
    %110 = memref.load %arg2[%c17] : memref<18xf32, #tpu.memory_space<smem>>
    %c5_50 = arith.constant 5 : index
    %111 = memref.load %arg3[%c5_50] : memref<6xf32, #tpu.memory_space<smem>>
    %112 = vector.broadcast %108 : f32 to vector<1x128xf32>
    %113 = arith.mulf %65, %112 : vector<1x128xf32>
    %114 = vector.broadcast %109 : f32 to vector<1x128xf32>
    %115 = arith.mulf %67, %114 : vector<1x128xf32>
    %116 = arith.addf %113, %115 : vector<1x128xf32>
    %117 = vector.broadcast %110 : f32 to vector<1x128xf32>
    %118 = arith.mulf %69, %117 : vector<1x128xf32>
    %119 = arith.addf %116, %118 : vector<1x128xf32>
    %120 = vector.broadcast %0 : f32 to vector<1x128xf32>
    %121 = arith.mulf %119, %120 : vector<1x128xf32>
    %122 = vector.broadcast %111 : f32 to vector<1x128xf32>
    %123 = arith.addf %121, %122 : vector<1x128xf32>
    %c1_51 = arith.constant 1 : index
    %c2_52 = arith.constant 2 : index
    %c0_53 = arith.constant 0 : index
    %c0_54 = arith.constant 0 : index
    %124 = vector.load %arg5[%c1_51, %c2_52, %c0_53, %c0_54] : memref<2x3x1x128xf32, #tpu.memory_space<vmem>>, vector<1x1x1x128xf32>
    %125 = vector.shape_cast %124 : vector<1x1x1x128xf32> to vector<1x128xf32>
    %126 = vector.shape_cast %123 : vector<1x128xf32> to vector<1x1x1x128xf32>
    tpu.vector_store %arg5[%c1_51, %c2_52, %c0_53, %c0_54], %126 {strides = array<i32>} : memref<2x3x1x128xf32, #tpu.memory_space<vmem>>, vector<1x1x1x128xf32>,
    return
  }
  func.func @transform_0(%arg0: i32) -> i32 {
    %c0_i32 = arith.constant 0 : i32
    %c0_i32_0 = arith.constant 0 : i32
    return %c0_i32 : i32
  }
  func.func @transform_1(%arg0: i32) -> i32 {
    %c0_i32 = arith.constant 0 : i32
    %c0_i32_0 = arith.constant 0 : i32
    return %c0_i32 : i32
  }
  func.func @transform_2(%arg0: i32) -> i32 {
    %c0_i32 = arith.constant 0 : i32
    %c0_i32_0 = arith.constant 0 : i32
    return %c0_i32 : i32
  }
  func.func @transform_3(%arg0: i32) -> (i32, i32, i32, i32) {
    %c0_i32 = arith.constant 0 : i32
    %c0_i32_0 = arith.constant 0 : i32
    %c0_i32_1 = arith.constant 0 : i32
    %c0_i32_2 = arith.constant 0 : i32
    return %c0_i32, %c0_i32_0, %arg0, %c0_i32_1 : i32, i32, i32, i32
  }
  func.func @transform_4(%arg0: i32) -> (i32, i32, i32, i32) {
    %c0_i32 = arith.constant 0 : i32
    %c0_i32_0 = arith.constant 0 : i32
    %c0_i32_1 = arith.constant 0 : i32
    %c0_i32_2 = arith.constant 0 : i32
    return %c0_i32, %c0_i32_0, %arg0, %c0_i32_1 : i32, i32, i32, i32
  }
}

</mosaic_0001>

<llo_original>
// kernel: tpu_custom_call.1
$region0: #{tpu_custom_call.1}
  #allocation0 [shape = 'u32[]', space=smem, size = 0x4, offset = 0x4, fixed_abs, tag = 'smem constant byte address 0x4 - core index']
  #allocation1 [shape = 'u32[72,128]{1,0:T(1,128)}', space=vmem, size = 0x9000, scoped, tag = 'internal scratch']
  #allocation2 [shape = 'f32[1]{0:T(128)S(6)}', space=smem, size = 0x200, scoped, tag = 'scoped memory for tpu_custom_call.1']
  %s0 = inlined_call_operand.<no memory space> [shape: f32[1], index: 0, kind: input, shape index: {}]
  %s1 = inlined_call_operand.vmem [shape: f32[18], index: 1, kind: input, shape index: {}]
  %s2 = inlined_call_operand.vmem [shape: f32[6], index: 2, kind: input, shape index: {}]
  %s3 = inlined_call_operand.hbm [shape: f32[2,3,1,128], index: 3, kind: input, shape index: {}]
  %s4 = inlined_call_operand.hbm [shape: f32[2,3,1,128], index: 4, kind: output, shape index: {}]
  %s5 = sld [smem:[#allocation0]]
  $region38: #{tpu_custom_call.1} parent=0
    _
  %s7 = ssub.s32 1, %s5
  %s8 = scalar_select 0, %s7, %s5
  %9 = sst [smem:[#allocation2]] %s0
  $region1: #{tpu_custom_call.1} parent=0
    #allocation3 [shape = 'u8[512]{0}', space=smem, size = 0x200, scoped, tag = 'input window, operand 1, single buffered']
    #allocation4 [shape = 's32[1]{0}', space=sflag, size = 0x4, scoped, tag = 'scoped memory for tpu_custom_call.1']
    #allocation5 [shape = 's32[1]{0}', space=sflag, size = 0x4, scoped, tag = 'scoped memory for tpu_custom_call.1']
    #allocation6 [shape = 's32[1]{0}', space=sflag, size = 0x4, scoped, tag = 'scoped memory for tpu_custom_call.1']
    #allocation7 [shape = 'u8[512]{0}', space=smem, size = 0x200, scoped, tag = 'input window, operand 2, single buffered']
    #allocation8 [shape = 's32[1]{0}', space=sflag, size = 0x4, scoped, tag = 'scoped memory for tpu_custom_call.1']
    #allocation9 [shape = 'u8[3072]{0}', space=vmem, size = 0xc00, scoped, tag = 'input window, operand 3, single buffered']
    #allocation10 [shape = 'u8[3072]{0}', space=vmem, size = 0xc00, scoped, tag = 'output window, operand 0, single buffered']
    %10 = vsyncpa [#allocation6], 0
    %11 = vsyncpa [#allocation8], 0
    %12 = vsyncpa [#allocation4], 0
    %13 = vsyncpa [#allocation5], 0
    // Predicated region
    $region2: #{tpu_custom_call.1} parent=1 // pred_check
      _
    $region3: #{tpu_custom_call.1} parent=1 // pred_check_branch
      %15 = sbr.rel (0) target = $region5
    $region4: #{tpu_custom_call.1} parent=1 // pred_region
      _
    $region5: #{tpu_custom_call.1} parent=1 // pred_fallthru
      _
    // Predicated region
    $region6: #{tpu_custom_call.1} parent=1 // pred_check
      _
    $region7: #{tpu_custom_call.1} parent=1 // pred_check_branch
      %17 = sbr.rel (0) target = $region9
    $region8: #{tpu_custom_call.1} parent=1 // pred_region
      %19 = vsyncadd [#allocation6], 0
      %s21 = sshll.u32 %s1, 4
      %s22 = int_to_ptr.vmem [resolvable:$true] %s21
      %24 = dma.vmem_to_smem %s22, 16, [#allocation3], [#allocation6]
    $region9: #{tpu_custom_call.1} parent=1 // pred_fallthru
      _
    // Predicated region
    $region10: #{tpu_custom_call.1} parent=1 // pred_check
      _
    $region11: #{tpu_custom_call.1} parent=1 // pred_check_branch
      %26 = sbr.rel (0) target = $region13
    $region12: #{tpu_custom_call.1} parent=1 // pred_region
      %28 = vsyncadd [#allocation8], 0
      %s30 = sshll.u32 %s2, 4
      %s31 = int_to_ptr.vmem [resolvable:$true] %s30
      %33 = dma.vmem_to_smem %s31, 16, [#allocation7], [#allocation8]
    $region13: #{tpu_custom_call.1} parent=1 // pred_fallthru
      _
    // Predicated region
    $region14: #{tpu_custom_call.1} parent=1 // pred_check
      _
    $region15: #{tpu_custom_call.1} parent=1 // pred_check_branch
      %35 = sbr.rel (0) target = $region17
    $region16: #{tpu_custom_call.1} parent=1 // pred_region
      %37 = vsyncadd [#allocation4], 0
      %s38 = sshll.u32 %s3, 4
      %s39 = int_to_ptr.hbm [resolvable:$true] %s38
      %s40 = sshll.u32 [#allocation9], 4
      %s41 = int_to_ptr.vmem [resolvable:$true] %s40
      %46 = dma.hbm_to_vmem [thread:$0]  %s39, 96, %s41, [#allocation4], 16, 16, 1
    $region17: #{tpu_custom_call.1} parent=1 // pred_fallthru
      _
    // Predicated region
    $region18: #{tpu_custom_call.1} parent=1 // pred_check
      _
    $region19: #{tpu_custom_call.1} parent=1 // pred_check_branch
      %48 = sbr.rel (0) target = $region21
    $region20: #{tpu_custom_call.1} parent=1 // pred_region
      %50 = dma.done [#allocation6], 16
    $region21: #{tpu_custom_call.1} parent=1 // pred_fallthru
      _
    // Predicated region
    $region22: #{tpu_custom_call.1} parent=1 // pred_check
      _
    $region23: #{tpu_custom_call.1} parent=1 // pred_check_branch
      %52 = sbr.rel (0) target = $region25
    $region24: #{tpu_custom_call.1} parent=1 // pred_region
      %54 = dma.done [#allocation8], 16
    $region25: #{tpu_custom_call.1} parent=1 // pred_fallthru
      _
    // Predicated region
    $region26: #{tpu_custom_call.1} parent=1 // pred_check
      _
    $region27: #{tpu_custom_call.1} parent=1 // pred_check_branch
      %56 = sbr.rel (0) target = $region29
    $region28: #{tpu_custom_call.1} parent=1 // pred_region
      %58 = dma.done [#allocation4], 96
    $region29: #{tpu_custom_call.1} parent=1 // pred_fallthru
      _
    %59 = sfence
    %s60 = sld [smem:[#allocation2]]
    %v61 = vld [vmem:[#allocation9] sm:$0x1]
    %s62 = scalar_lea.vmem [#allocation9], 1
    %v63 = vld [vmem:[%s62] sm:$0x1]
    %s64 = scalar_lea.vmem [#allocation9], 2
    %v65 = vld [vmem:[%s64] sm:$0x1]
    %s66 = sld [smem:[#allocation3]]
    %s67 = sld [smem:[#allocation3 + $0x3]]
    %s68 = sld [smem:[#allocation3 + $0x6]]
    %s69 = sld [smem:[#allocation7]]
    %v70 = vstv %s66
    %v71 = vmul.f32 %v61, %v70
    %v72 = vstv %s67
    %v73 = vmul.f32 %v63, %v72
    %v74 = vadd.f32 %v71, %v73
    %v75 = vstv %s68
    %v76 = vmul.f32 %v65, %v75
    %v77 = vadd.f32 %v74, %v76
    %v78 = vstv %s60
    %v79 = vmul.f32 %v77, %v78
    %v80 = vstv %s69
    %v81 = vadd.f32 %v79, %v80
    %82 = vst [vmem:[#allocation10] sm:$0x1] %v81
    %s83 = sld [smem:[#allocation3 + $0x1]]
    %s84 = sld [smem:[#allocation3 + $0x4]]
    %s85 = sld [smem:[#allocation3 + $0x7]]
    %s86 = sld [smem:[#allocation7 + $0x1]]
    %v87 = vstv %s83
    %v88 = vmul.f32 %v61, %v87
    %v89 = vstv %s84
    %v90 = vmul.f32 %v63, %v89
    %v91 = vadd.f32 %v88, %v90
    %v92 = vstv %s85
    %v93 = vmul.f32 %v65, %v92
    %v94 = vadd.f32 %v91, %v93
    %v95 = vmul.f32 %v94, %v78
    %v96 = vstv %s86
    %v97 = vadd.f32 %v95, %v96
    %s98 = scalar_lea.vmem [#allocation10], 1
    %99 = vst [vmem:[%s98] sm:$0x1] %v97
    %s100 = sld [smem:[#allocation3 + $0x2]]
    %s101 = sld [smem:[#allocation3 + $0x5]]
    %s102 = sld [smem:[#allocation3 + $0x8]]
    %s103 = sld [smem:[#allocation7 + $0x2]]
    %v104 = vstv %s100
    %v105 = vmul.f32 %v61, %v104
    %v106 = vstv %s101
    %v107 = vmul.f32 %v63, %v106
    %v108 = vadd.f32 %v105, %v107
    %v109 = vstv %s102
    %v110 = vmul.f32 %v65, %v109
    %v111 = vadd.f32 %v108, %v110
    %v112 = vmul.f32 %v111, %v78
    %v113 = vstv %s103
    %v114 = vadd.f32 %v112, %v113
    %s115 = scalar_lea.vmem [#allocation10], 2
    %116 = vst [vmem:[%s115] sm:$0x1] %v114
    %s117 = scalar_lea.vmem [#allocation9], 3
    %v118 = vld [vmem:[%s117] sm:$0x1]
    %s119 = scalar_lea.vmem [#allocation9], 4
    %v120 = vld [vmem:[%s119] sm:$0x1]
    %s121 = scalar_lea.vmem [#allocation9], 5
    %v122 = vld [vmem:[%s121] sm:$0x1]
    %s123 = sld [smem:[#allocation3 + $0x9]]
    %s124 = sld [smem:[#allocation3 + $0xc]]
    %s125 = sld [smem:[#allocation3 + $0xf]]
    %s126 = sld [smem:[#allocation7 + $0x3]]
    %v127 = vstv %s123
    %v128 = vmul.f32 %v118, %v127
    %v129 = vstv %s124
    %v130 = vmul.f32 %v120, %v129
    %v131 = vadd.f32 %v128, %v130
    %v132 = vstv %s125
    %v133 = vmul.f32 %v122, %v132
    %v134 = vadd.f32 %v131, %v133
    %v135 = vmul.f32 %v134, %v78
    %v136 = vstv %s126
    %v137 = vadd.f32 %v135, %v136
    %s138 = scalar_lea.vmem [#allocation10], 3
    %139 = vst [vmem:[%s138] sm:$0x1] %v137
    %s140 = sld [smem:[#allocation3 + $0xa]]
    %s141 = sld [smem:[#allocation3 + $0xd]]
    %s142 = sld [smem:[#allocation3 + $0x10]]
    %s143 = sld [smem:[#allocation7 + $0x4]]
    %v144 = vstv %s140
    %v145 = vmul.f32 %v118, %v144
    %v146 = vstv %s141
    %v147 = vmul.f32 %v120, %v146
    %v148 = vadd.f32 %v145, %v147
    %v149 = vstv %s142
    %v150 = vmul.f32 %v122, %v149
    %v151 = vadd.f32 %v148, %v150
    %v152 = vmul.f32 %v151, %v78
    %v153 = vstv %s143
    %v154 = vadd.f32 %v152, %v153
    %s155 = scalar_lea.vmem [#allocation10], 4
    %156 = vst [vmem:[%s155] sm:$0x1] %v154
    %s157 = sld [smem:[#allocation3 + $0xb]]
    %s158 = sld [smem:[#allocation3 + $0xe]]
    %s159 = sld [smem:[#allocation3 + $0x11]]
    %s160 = sld [smem:[#allocation7 + $0x5]]
    %v161 = vstv %s157
    %v162 = vmul.f32 %v118, %v161
    %v163 = vstv %s158
    %v164 = vmul.f32 %v120, %v163
    %v165 = vadd.f32 %v162, %v164
    %v166 = vstv %s159
    %v167 = vmul.f32 %v122, %v166
    %v168 = vadd.f32 %v165, %v167
    %v169 = vmul.f32 %v168, %v78
    %v170 = vstv %s160
    %v171 = vadd.f32 %v169, %v170
    %s172 = scalar_lea.vmem [#allocation10], 5
    %173 = vst [vmem:[%s172] sm:$0x1] %v171
    // Predicated region
    $region30: #{tpu_custom_call.1} parent=1 // pred_check
      _
    $region31: #{tpu_custom_call.1} parent=1 // pred_check_branch
      %175 = sbr.rel (0) target = $region33
    $region32: #{tpu_custom_call.1} parent=1 // pred_region
      %177 = vsyncadd [#allocation5], 0
      %s178 = sshll.u32 [#allocation10], 4
      %s179 = int_to_ptr.vmem [resolvable:$true] %s178
      %s180 = sshll.u32 %s4, 4
      %s181 = int_to_ptr.hbm [resolvable:$true] %s180
      %186 = dma.vmem_to_hbm [thread:$0]  %s179, 96, %s181, [#allocation5], 16, 16, 1
    $region33: #{tpu_custom_call.1} parent=1 // pred_fallthru
      _
    // Predicated region
    $region34: #{tpu_custom_call.1} parent=1 // pred_check
      _
    $region35: #{tpu_custom_call.1} parent=1 // pred_check_branch
      %188 = sbr.rel (0) target = $region37
    $region36: #{tpu_custom_call.1} parent=1 // pred_region
      %190 = dma.done [#allocation5], 96
    $region37: #{tpu_custom_call.1} parent=1 // pred_fallthru
      _
    %191 = vsyncpa [#allocation4], 1
    %192 = vsyncpa [#allocation5], 1
    %193 = vsyncpa [#allocation6], 1
    %194 = vsyncpa [#allocation8], 1

</llo_original>
